<compile_context>
chip_gen: v5e
topology: v5e:2x2
jax: 0.10.0
libtpu: 0.0.40
codegen_flags: <defaults>
</compile_context>

<pallas_src>
import functools

import jax
import jax.numpy as jnp
from jax.experimental import pallas as pl
from jax.experimental.pallas import tpu as pltpu

EPS = 1e-6


# ----------------------------------------------------------------------------
# Kernel
# ----------------------------------------------------------------------------
def _layernorm_f32(x, gamma, beta, d):
    # torch-style LayerNorm: unbiased std, divide by (std + eps).  All f32.
    mean = jnp.mean(x, axis=-1, keepdims=True)
    diff = x - mean
    var_unbiased = jnp.sum(diff * diff, axis=-1, keepdims=True) * (1.0 / (d - 1))
    std = jnp.sqrt(var_unbiased)
    inv = pl.reciprocal(std + EPS, approx=True)          # EUP slot, frees VALU
    return gamma * (diff * inv) + beta


def _sublayer_connection_kernel(seed_ref, x_ref, gamma_ref, beta_ref,
                                w_ref, b_ref, out_ref, *scratch,
                                keep_prob, training, d_full, col_tiled):
    j = pl.program_id(1)
    tn = out_ref.shape[-1]

    if col_tiled:
        xn_ref = scratch[0]                               # (TM, D) bf16 scratch
        # LayerNorm once per row tile; reuse across all column tiles.
        @pl.when(j == 0)
        def _():
            x_full = x_ref[...].astype(jnp.float32)
            xn = _layernorm_f32(x_full, gamma_ref[...], beta_ref[...], d_full)
            xn_ref[...] = xn.astype(jnp.bfloat16)
        lhs = xn_ref[...]
        c0 = pl.multiple_of(j * tn, tn)                   # tn is a multiple of 128
        x_res = x_ref[:, pl.ds(c0, tn)].astype(jnp.float32)
    else:
        x_full = x_ref[...].astype(jnp.float32)
        lhs = _layernorm_f32(x_full, gamma_ref[...], beta_ref[...],
                             d_full).astype(jnp.bfloat16)
        x_res = x_full

    # sublayer: Linear(D -> TN) on the MXU, bf16 operands / f32 accumulation.
    y = jnp.dot(lhs, w_ref[...], preferred_element_type=jnp.float32)
    y = y + b_ref[...]

    # Dropout (inverted scaling).  Identity in eval mode.  The mask comes from
    # a counter-based hash of the global element index + seed: pure jnp ops,
    # so it lowers on TPU Mosaic and in interpret mode (no pltpu.prng_*).
    if training and keep_prob < 1.0:
        tm = y.shape[0]
        rows = pl.program_id(0) * tm + jax.lax.broadcasted_iota(jnp.int32, y.shape, 0)
        cols = j * tn + jax.lax.broadcasted_iota(jnp.int32, y.shape, 1)
        idx = (rows * d_full + cols).astype(jnp.uint32)
        seed_u = seed_ref[0].astype(jnp.uint32)
        h = idx + seed_u * jnp.uint32(0x9E3779B9)
        h = h ^ (h >> 16)
        h = h * jnp.uint32(0x7FEB352D)
        h = h ^ (h >> 15)
        h = h * jnp.uint32(0x846CA68B)
        h = h ^ (h >> 16)
        r = (h >> 8).astype(jnp.int32)                    # 24 uniform bits, >= 0
        threshold = jnp.int32(min(int(keep_prob * (1 << 24)), (1 << 24) - 1))
        keep = r < threshold                              # Bernoulli(keep_prob)
        y = jnp.where(keep, y * (1.0 / keep_prob), 0.0)
        # TODO(synk): not bit-identical to torch's dropout RNG stream.

    out_ref[...] = (x_res + y).astype(out_ref.dtype)


# ----------------------------------------------------------------------------
# VMEM planning (generation-aware)
# ----------------------------------------------------------------------------
def _vmem_budget_bytes():
    cap = 128 << 20                                       # v5e/v6e physical VMEM
    try:
        info = pltpu.get_tpu_info()
        cap = int(getattr(info, "vmem_capacity_bytes", cap))
    except Exception:
        pass                                              # CPU / interpret fallback
    # Leave headroom under physical; also used as vmem_limit_bytes so the plan
    # is honored on v5e (16 MiB default scoped), v6e (32 MiB) and v7x (64 MiB
    # physical) alike.
    return max(16 << 20, int(cap * 0.45))


def _plan_tiles(n, d, budget):
    """Pick (TM row tile, TN weight-column tile, col_tiled flag)."""
    # Column-tile the (D, D) weight when a single bf16 slab exceeds ~8 MiB
    # (needed for v7x's 64 MiB VMEM at D >~ 2K); requires lane-dense D.
    w_cap = 8 << 20
    col_tiled = (d % 128 == 0) and (d * d * 2 > w_cap)
    if col_tiled:
        tn = 128
        for cand in (2048, 1024, 512, 256, 128):
            if d % cand == 0 and d * cand * 2 <= w_cap:
                tn = cand
                break
    else:
        tn = d

    w_bufs = 2 if col_tiled else 1                        # streaming vs resident W
    weight_bytes = w_bufs * (d * tn * 2 + tn * 4) + 2 * d * 4

    # Per row: double-buffered x/out tiles + bf16 xn scratch (if col-tiled)
    # + ~6 live f32 (TM, D) intermediates (x, diff, xn, y, dropout ints, ...).
    per_row = 2 * d * 4 + 2 * tn * 4 + (d * 2 if col_tiled else 0) + 6 * d * 4

    act_budget = max(budget - weight_bytes, 1 << 20)
    tm = max(8, int(act_budget * 0.8) // per_row)
    tm = min(tm, n)
    if tm >= 256:
        tm = (tm // 256) * 256                            # MXU-aligned row tiles
    else:
        tm = max(8, (tm // 8) * 8)
    return int(tm), int(tn), col_tiled


# ----------------------------------------------------------------------------
# Wrapper
# ----------------------------------------------------------------------------
def sublayer_connection(x, gamma, beta, w, b, *, dropout_p=0.1, training=False,
                        seed=0, block_rows=None, stream_buffers=2):
    """x: (B, S, D) float32.  gamma, beta, b: (D,).  w: (D, D)."""
    B, S, D = x.shape
    N = B * S
    budget = _vmem_budget_bytes()
    tm_auto, tn, col_tiled = _plan_tiles(N, D, budget)
    tm = int(block_rows) if block_rows is not None else tm_auto
    tm = max(8, (tm // 8) * 8)

    xf = x.reshape(N, D)
    n_pad = -(-N // tm) * tm                              # pad ragged N (rows are
    if n_pad != N:                                        # independent under LN)
        xf = jnp.pad(xf, ((0, n_pad - N), (0, 0)))

    gamma2 = gamma.reshape(1, D).astype(jnp.float32)
    beta2 = beta.reshape(1, D).astype(jnp.float32)
    b2 = b.reshape(1, D).astype(jnp.float32)
    w_bf16 = w.astype(jnp.bfloat16)
    seed_arr = jnp.asarray([seed], dtype=jnp.int32)

    kernel = functools.partial(
        _sublayer_connection_kernel,
        keep_prob=1.0 - float(dropout_p),
        training=bool(training),
        d_full=int(D),
        col_tiled=bool(col_tiled),
    )

    grid = (n_pad // tm, D // tn)
    scratch_shapes = [pltpu.VMEM((tm, D), jnp.bfloat16)] if col_tiled else []

    def _spec(shape, index_map, buffered=None):
        if buffered is None:
            return pl.BlockSpec(shape, index_map)
        return pl.BlockSpec(shape, index_map, pipeline_mode=pl.Buffered(buffered))

    def build(use_buffer_hints):
        const_buf = 1 if use_buffer_hints else None            # gamma/beta: const idx
        w_buf = 1 if (use_buffer_hints and not col_tiled) else None
        x_buf = stream_buffers if (use_buffer_hints and stream_buffers != 2) else None
        in_specs = [
            pl.BlockSpec(memory_space=pltpu.MemorySpace.SMEM),  # seed scalar
            _spec((tm, D), lambda i, j: (i, 0), x_buf),         # x row tile (stream)
            _spec((1, D), lambda i, j: (0, 0), const_buf),      # gamma (resident)
            _spec((1, D), lambda i, j: (0, 0), const_buf),      # beta  (resident)
            _spec((D, tn), lambda i, j: (0, j), w_buf),         # W bf16
            _spec((1, tn), lambda i, j: (0, j), w_buf),         # bias
        ]
        grid_spec = pltpu.PrefetchScalarGridSpec(
            num_scalar_prefetch=0,
            grid=grid,
            in_specs=in_specs,
            out_specs=pl.BlockSpec((tm, tn), lambda i, j: (i, j)),
            scratch_shapes=scratch_shapes,
        )
        return pl.pallas_call(
            kernel,
            out_shape=jax.ShapeDtypeStruct((n_pad, D), x.dtype),
            grid_spec=grid_spec,
            compiler_params=pltpu.CompilerParams(
                dimension_semantics=("parallel", "arbitrary"),
                vmem_limit_bytes=int(budget)),
            cost_estimate=pl.CostEstimate(
                flops=2 * n_pad * D * D,
                transcendentals=n_pad,
                bytes_accessed=int(2 * n_pad * D * 4 + D * D * 2 + 4 * D * 4)),
        )

    args = (seed_arr, xf, gamma2, beta2, w_bf16, b2)
    try:
        out_flat = build(True)(*args)
    except Exception:
        # TODO(synk): pipeline_mode=pl.Buffered hints rejected by this jax
        # build; fall back to default (double-buffered) BlockSpecs.
        out_flat = build(False)(*args)

    if n_pad != N:
        out_flat = out_flat[:N]
    return out_flat.reshape(B, S, D)


# ----------------------------------------------------------------------------
# Pure-JAX reference (eval-mode dropout), mirroring the torch forward and the
# kernel's bf16-operand / f32-accumulate matmul path.
# ----------------------------------------------------------------------------
def _reference(x, gamma, beta, w, b):
    d = x.shape[-1]
    mean = jnp.mean(x, axis=-1, keepdims=True)
    diff = x - mean
    std = jnp.sqrt(jnp.sum(diff * diff, axis=-1, keepdims=True) / (d - 1))
    xn = gamma * diff / (std + EPS) + beta
    y = jnp.einsum("bsd,de->bse",
                   xn.astype(jnp.bfloat16), w.astype(jnp.bfloat16),
                   preferred_element_type=jnp.float32).astype(jnp.float32) + b
    return x + y


if __name__ == "__main__":
    key = jax.random.PRNGKey(0)
    B, S, D = 2, 8, 32  # batch, seq, hidden ("size" of SublayerConnection)

    kx, kw, kb = jax.random.split(key, 3)
    x = jax.random.normal(kx, (B, S, D), dtype=jnp.float32)

    # LayerNorm params exactly as in __init__: a_2 = ones, b_2 = zeros.
    gamma = jnp.ones((D,), dtype=jnp.float32)
    beta = jnp.zeros((D,), dtype=jnp.float32)

    # Deterministic synthetic sublayer (Linear D -> D).
    w = jax.random.normal(kw, (D, D), dtype=jnp.float32) * (1.0 / jnp.sqrt(D))
    b = jax.random.normal(kb, (D,), dtype=jnp.float32) * 0.01

    # Eval mode.  block_rows=8 -> 2 row tiles so the pipelined multi-tile path
    # is actually exercised at this tiny test shape.
    out = sublayer_connection(x, gamma, beta, w, b,
                              dropout_p=0.1, training=False, block_rows=8)
    out = jax.block_until_ready(out)

    ref = _reference(x, gamma, beta, w, b)
    assert out.shape == (B, S, D)
    # Tolerance covers bf16 MXU operands + EUP approximate reciprocal.
    assert jnp.allclose(out, ref, atol=5e-2, rtol=5e-2), "mismatch vs reference"

    # Training-mode smoke test: hash-based dropout path compiles, runs, finite.
    out_tr = sublayer_connection(x, gamma, beta, w, b,
                                 dropout_p=0.1, training=True, seed=123,
                                 block_rows=8)
    out_tr = jax.block_until_ready(out_tr)
    assert out_tr.shape == (B, S, D)
    assert bool(jnp.all(jnp.isfinite(out_tr)))

    print("KERNEL_OK")
</pallas_src>

<mosaic_0001>
module attributes {stable_mosaic.version = 11 : i64} {
  func.func @_sublayer_connection_kernel(%arg0: i32, %arg1: i32, %arg2: memref<1xi32, #tpu.memory_space<smem>>, %arg3: memref<8x32xf32, #tpu.memory_space<vmem>>, %arg4: memref<1x32xf32, #tpu.memory_space<vmem>>, %arg5: memref<1x32xf32, #tpu.memory_space<vmem>>, %arg6: memref<32x32xbf16, #tpu.memory_space<vmem>>, %arg7: memref<1x32xf32, #tpu.memory_space<vmem>>, %arg8: memref<8x32xf32, #tpu.memory_space<vmem>>) attributes {dimension_semantics = [#tpu.dimension_semantics<parallel>, #tpu.dimension_semantics<arbitrary>], iteration_bounds = array<i64: 2, 1>, scalar_prefetch = 0 : i64, scratch_operands = 0 : i64, tpu.core_type = #tpu.core_type<tc>, window_params = [{transform_indices = @transform_0, window_bounds = array<i64: 1>}, {transform_indices = @transform_1, window_bounds = array<i64: 8, 32>}, {pipeline_mode = #tpu.pipeline_mode<synchronous>, transform_indices = @transform_2, window_bounds = array<i64: 1, 32>}, {pipeline_mode = #tpu.pipeline_mode<synchronous>, transform_indices = @transform_3, window_bounds = array<i64: 1, 32>}, {pipeline_mode = #tpu.pipeline_mode<synchronous>, transform_indices = @transform_4, window_bounds = array<i64: 32, 32>}, {pipeline_mode = #tpu.pipeline_mode<synchronous>, transform_indices = @transform_5, window_bounds = array<i64: 1, 32>}, {transform_indices = @transform_6, window_bounds = array<i64: 8, 32>}]} {
    %c0 = arith.constant 0 : index
    %c0_0 = arith.constant 0 : index
    %0 = vector.load %arg3[%c0, %c0_0] : memref<8x32xf32, #tpu.memory_space<vmem>>, vector<8x32xf32>
    %c0_1 = arith.constant 0 : index
    %c0_2 = arith.constant 0 : index
    %1 = vector.load %arg4[%c0_1, %c0_2] : memref<1x32xf32, #tpu.memory_space<vmem>>, vector<1x32xf32>
    %c0_3 = arith.constant 0 : index
    %c0_4 = arith.constant 0 : index
    %2 = vector.load %arg5[%c0_3, %c0_4] : memref<1x32xf32, #tpu.memory_space<vmem>>, vector<1x32xf32>
    %cst = arith.constant dense<0.000000e+00> : vector<8xf32>
    %3 = vector.multi_reduction <add>, %0, %cst [1] : vector<8x32xf32> to vector<8xf32>
    %4 = vector.shape_cast %3 : vector<8xf32> to vector<8x1xf32>
    %cst_5 = arith.constant 3.200000e+01 : f32
    %5 = vector.broadcast %cst_5 : f32 to vector<8x1xf32>
    %6 = arith.divf %4, %5 : vector<8x1xf32>
    %7 = vector.broadcast %6 : vector<8x1xf32> to vector<8x32xf32>
    %8 = arith.subf %0, %7 : vector<8x32xf32>
    %9 = arith.mulf %8, %8 : vector<8x32xf32>
    %cst_6 = arith.constant dense<0.000000e+00> : vector<8xf32>
    %10 = vector.multi_reduction <add>, %9, %cst_6 [1] : vector<8x32xf32> to vector<8xf32>
    %11 = vector.shape_cast %10 : vector<8xf32> to vector<8x1xf32>
    %cst_7 = arith.constant 0.0322580636 : f32
    %12 = vector.broadcast %cst_7 : f32 to vector<8x1xf32>
    %13 = arith.mulf %11, %12 : vector<8x1xf32>
    %14 = math.sqrt %13 : vector<8x1xf32>
    %cst_8 = arith.constant 9.99999997E-7 : f32
    %15 = vector.broadcast %cst_8 : f32 to vector<8x1xf32>
    %16 = arith.addf %14, %15 : vector<8x1xf32>
    %17 = tpu.reciprocal %16 {approx = true} : vector<8x1xf32> -> vector<8x1xf32>
    %18 = vector.broadcast %17 : vector<8x1xf32> to vector<8x32xf32>
    %19 = arith.mulf %8, %18 : vector<8x32xf32>
    %20 = vector.broadcast %1 : vector<1x32xf32> to vector<8x32xf32>
    %21 = arith.mulf %20, %19 : vector<8x32xf32>
    %22 = vector.broadcast %2 : vector<1x32xf32> to vector<8x32xf32>
    %23 = arith.addf %21, %22 : vector<8x32xf32>
    %24 = arith.truncf %23 : vector<8x32xf32> to vector<8x32xbf16>
    %c0_9 = arith.constant 0 : index
    %c0_10 = arith.constant 0 : index
    %25 = vector.load %arg6[%c0_9, %c0_10] : memref<32x32xbf16, #tpu.memory_space<vmem>>, vector<32x32xbf16>
    %cst_11 = arith.constant dense<0.000000e+00> : vector<8x32xf32>
    %26 = tpu.matmul %24, %25, %cst_11 {dimension_numbers = #tpu.dot_dimension_numbers<[1], [0], [0], [1], [0, 0, 1, 1], [], []>} : vector<8x32xbf16>, vector<32x32xbf16>, vector<8x32xf32> -> vector<8x32xf32>
    %c0_12 = arith.constant 0 : index
    %c0_13 = arith.constant 0 : index
    %27 = vector.load %arg7[%c0_12, %c0_13] : memref<1x32xf32, #tpu.memory_space<vmem>>, vector<1x32xf32>
    %28 = vector.broadcast %27 : vector<1x32xf32> to vector<8x32xf32>
    %29 = arith.addf %26, %28 : vector<8x32xf32>
    %30 = arith.addf %0, %29 : vector<8x32xf32>
    %c0_14 = arith.constant 0 : index
    %c0_15 = arith.constant 0 : index
    %31 = vector.load %arg8[%c0_14, %c0_15] : memref<8x32xf32, #tpu.memory_space<vmem>>, vector<8x32xf32>
    tpu.vector_store %arg8[%c0_14, %c0_15], %30 {strides = array<i32>} : memref<8x32xf32, #tpu.memory_space<vmem>>, vector<8x32xf32>,
    return
  }
  func.func @transform_0(%arg0: i32, %arg1: i32) -> i32 {
    %c0_i32 = arith.constant 0 : i32
    %c0_i32_0 = arith.constant 0 : i32
    return %c0_i32 : i32
  }
  func.func @transform_1(%arg0: i32, %arg1: i32) -> (i32, i32) {
    %c0_i32 = arith.constant 0 : i32
    %c0_i32_0 = arith.constant 0 : i32
    return %arg0, %c0_i32 : i32, i32
  }
  func.func @transform_2(%arg0: i32, %arg1: i32) -> (i32, i32) {
    %c0_i32 = arith.constant 0 : i32
    %c0_i32_0 = arith.constant 0 : i32
    %c0_i32_1 = arith.constant 0 : i32
    return %c0_i32, %c0_i32_0 : i32, i32
  }
  func.func @transform_3(%arg0: i32, %arg1: i32) -> (i32, i32) {
    %c0_i32 = arith.constant 0 : i32
    %c0_i32_0 = arith.constant 0 : i32
    %c0_i32_1 = arith.constant 0 : i32
    return %c0_i32, %c0_i32_0 : i32, i32
  }
  func.func @transform_4(%arg0: i32, %arg1: i32) -> (i32, i32) {
    %c0_i32 = arith.constant 0 : i32
    %c0_i32_0 = arith.constant 0 : i32
    return %c0_i32, %arg1 : i32, i32
  }
  func.func @transform_5(%arg0: i32, %arg1: i32) -> (i32, i32) {
    %c0_i32 = arith.constant 0 : i32
    %c0_i32_0 = arith.constant 0 : i32
    return %c0_i32, %arg1 : i32, i32
  }
  func.func @transform_6(%arg0: i32, %arg1: i32) -> (i32, i32) {
    %c0_i32 = arith.constant 0 : i32
    return %arg0, %arg1 : i32, i32
  }
}

module attributes {stable_mosaic.version = 11 : i64} {
  func.func @_sublayer_connection_kernel(%arg0: i32, %arg1: i32, %arg2: memref<1xi32, #tpu.memory_space<smem>>, %arg3: memref<8x32xf32, #tpu.memory_space<vmem>>, %arg4: memref<1x32xf32, #tpu.memory_space<vmem>>, %arg5: memref<1x32xf32, #tpu.memory_space<vmem>>, %arg6: memref<32x32xbf16, #tpu.memory_space<vmem>>, %arg7: memref<1x32xf32, #tpu.memory_space<vmem>>, %arg8: memref<8x32xf32, #tpu.memory_space<vmem>>) attributes {dimension_semantics = [#tpu.dimension_semantics<parallel>, #tpu.dimension_semantics<arbitrary>], iteration_bounds = array<i64: 2, 1>, scalar_prefetch = 0 : i64, scratch_operands = 0 : i64, tpu.core_type = #tpu.core_type<tc>, window_params = [{transform_indices = @transform_0, window_bounds = array<i64: 1>}, {transform_indices = @transform_1, window_bounds = array<i64: 8, 32>}, {pipeline_mode = #tpu.pipeline_mode<synchronous>, transform_indices = @transform_2, window_bounds = array<i64: 1, 32>}, {pipeline_mode = #tpu.pipeline_mode<synchronous>, transform_indices = @transform_3, window_bounds = array<i64: 1, 32>}, {transform_indices = @transform_4, window_bounds = array<i64: 32, 32>}, {transform_indices = @transform_5, window_bounds = array<i64: 1, 32>}, {transform_indices = @transform_6, window_bounds = array<i64: 8, 32>}]} {
    %c0 = arith.constant 0 : index
    %c0_0 = arith.constant 0 : index
    %0 = vector.load %arg3[%c0, %c0_0] : memref<8x32xf32, #tpu.memory_space<vmem>>, vector<8x32xf32>
    %c0_1 = arith.constant 0 : index
    %c0_2 = arith.constant 0 : index
    %1 = vector.load %arg4[%c0_1, %c0_2] : memref<1x32xf32, #tpu.memory_space<vmem>>, vector<1x32xf32>
    %c0_3 = arith.constant 0 : index
    %c0_4 = arith.constant 0 : index
    %2 = vector.load %arg5[%c0_3, %c0_4] : memref<1x32xf32, #tpu.memory_space<vmem>>, vector<1x32xf32>
    %cst = arith.constant dense<0.000000e+00> : vector<8xf32>
    %3 = vector.multi_reduction <add>, %0, %cst [1] : vector<8x32xf32> to vector<8xf32>
    %4 = vector.shape_cast %3 : vector<8xf32> to vector<8x1xf32>
    %cst_5 = arith.constant 3.200000e+01 : f32
    %5 = vector.broadcast %cst_5 : f32 to vector<8x1xf32>
    %6 = arith.divf %4, %5 : vector<8x1xf32>
    %7 = vector.broadcast %6 : vector<8x1xf32> to vector<8x32xf32>
    %8 = arith.subf %0, %7 : vector<8x32xf32>
    %9 = arith.mulf %8, %8 : vector<8x32xf32>
    %cst_6 = arith.constant dense<0.000000e+00> : vector<8xf32>
    %10 = vector.multi_reduction <add>, %9, %cst_6 [1] : vector<8x32xf32> to vector<8xf32>
    %11 = vector.shape_cast %10 : vector<8xf32> to vector<8x1xf32>
    %cst_7 = arith.constant 0.0322580636 : f32
    %12 = vector.broadcast %cst_7 : f32 to vector<8x1xf32>
    %13 = arith.mulf %11, %12 : vector<8x1xf32>
    %14 = math.sqrt %13 : vector<8x1xf32>
    %cst_8 = arith.constant 9.99999997E-7 : f32
    %15 = vector.broadcast %cst_8 : f32 to vector<8x1xf32>
    %16 = arith.addf %14, %15 : vector<8x1xf32>
    %17 = tpu.reciprocal %16 {approx = true} : vector<8x1xf32> -> vector<8x1xf32>
    %18 = vector.broadcast %17 : vector<8x1xf32> to vector<8x32xf32>
    %19 = arith.mulf %8, %18 : vector<8x32xf32>
    %20 = vector.broadcast %1 : vector<1x32xf32> to vector<8x32xf32>
    %21 = arith.mulf %20, %19 : vector<8x32xf32>
    %22 = vector.broadcast %2 : vector<1x32xf32> to vector<8x32xf32>
    %23 = arith.addf %21, %22 : vector<8x32xf32>
    %24 = arith.truncf %23 : vector<8x32xf32> to vector<8x32xbf16>
    %c0_9 = arith.constant 0 : index
    %c0_10 = arith.constant 0 : index
    %25 = vector.load %arg6[%c0_9, %c0_10] : memref<32x32xbf16, #tpu.memory_space<vmem>>, vector<32x32xbf16>
    %cst_11 = arith.constant dense<0.000000e+00> : vector<8x32xf32>
    %26 = tpu.matmul %24, %25, %cst_11 {dimension_numbers = #tpu.dot_dimension_numbers<[1], [0], [0], [1], [0, 0, 1, 1], [], []>} : vector<8x32xbf16>, vector<32x32xbf16>, vector<8x32xf32> -> vector<8x32xf32>
    %c0_12 = arith.constant 0 : index
    %c0_13 = arith.constant 0 : index
    %27 = vector.load %arg7[%c0_12, %c0_13] : memref<1x32xf32, #tpu.memory_space<vmem>>, vector<1x32xf32>
    %28 = vector.broadcast %27 : vector<1x32xf32> to vector<8x32xf32>
    %29 = arith.addf %26, %28 : vector<8x32xf32>
    %30 = arith.addf %0, %29 : vector<8x32xf32>
    %c0_14 = arith.constant 0 : index
    %c0_15 = arith.constant 0 : index
    %31 = vector.load %arg8[%c0_14, %c0_15] : memref<8x32xf32, #tpu.memory_space<vmem>>, vector<8x32xf32>
    tpu.vector_store %arg8[%c0_14, %c0_15], %30 {strides = array<i32>} : memref<8x32xf32, #tpu.memory_space<vmem>>, vector<8x32xf32>,
    return
  }
  func.func @transform_0(%arg0: i32, %arg1: i32) -> i32 {
    %c0_i32 = arith.constant 0 : i32
    %c0_i32_0 = arith.constant 0 : i32
    return %c0_i32 : i32
  }
  func.func @transform_1(%arg0: i32, %arg1: i32) -> (i32, i32) {
    %c0_i32 = arith.constant 0 : i32
    %c0_i32_0 = arith.constant 0 : i32
    return %arg0, %c0_i32 : i32, i32
  }
  func.func @transform_2(%arg0: i32, %arg1: i32) -> (i32, i32) {
    %c0_i32 = arith.constant 0 : i32
    %c0_i32_0 = arith.constant 0 : i32
    %c0_i32_1 = arith.constant 0 : i32
    return %c0_i32, %c0_i32_0 : i32, i32
  }
  func.func @transform_3(%arg0: i32, %arg1: i32) -> (i32, i32) {
    %c0_i32 = arith.constant 0 : i32
    %c0_i32_0 = arith.constant 0 : i32
    %c0_i32_1 = arith.constant 0 : i32
    return %c0_i32, %c0_i32_0 : i32, i32
  }
  func.func @transform_4(%arg0: i32, %arg1: i32) -> (i32, i32) {
    %c0_i32 = arith.constant 0 : i32
    %c0_i32_0 = arith.constant 0 : i32
    return %c0_i32, %arg1 : i32, i32
  }
  func.func @transform_5(%arg0: i32, %arg1: i32) -> (i32, i32) {
    %c0_i32 = arith.constant 0 : i32
    %c0_i32_0 = arith.constant 0 : i32
    return %c0_i32, %arg1 : i32, i32
  }
  func.func @transform_6(%arg0: i32, %arg1: i32) -> (i32, i32) {
    %c0_i32 = arith.constant 0 : i32
    return %arg0, %arg1 : i32, i32
  }
}

</mosaic_0001>

<llo_original>
// kernel: tpu_custom_call.1
$region0: #{tpu_custom_call.1}
  #allocation0 [shape = 'u32[]', space=smem, size = 0x4, offset = 0x4, fixed_abs, tag = 'smem constant byte address 0x4 - core index']
  #allocation1 [shape = 'u32[72,128]{1,0:T(1,128)}', space=vmem, size = 0x9000, scoped, tag = 'internal scratch']
  #allocation2 [shape = 's32[1]{0:T(128)S(6)}', space=smem, size = 0x200, scoped, tag = 'scoped memory for tpu_custom_call.1']
  %s0 = inlined_call_operand.<no memory space> [shape: s32[1], index: 0, kind: input, shape index: {}]
  %s1 = inlined_call_operand.hbm [shape: f32[16,32], index: 1, kind: input, shape index: {}]
  %s2 = inlined_call_operand.vmem [shape: f32[1,32], index: 2, kind: input, shape index: {}]
  %s3 = inlined_call_operand.vmem [shape: f32[1,32], index: 3, kind: input, shape index: {}]
  %s4 = inlined_call_operand.hbm [shape: bf16[32,32], index: 4, kind: input, shape index: {}]
  %s5 = inlined_call_operand.vmem [shape: f32[1,32], index: 5, kind: input, shape index: {}]
  %s6 = inlined_call_operand.hbm [shape: f32[16,32], index: 6, kind: output, shape index: {}]
  %s7 = sld [smem:[#allocation0]]
  $region65: #{tpu_custom_call.1} parent=0
    _
  %s9 = ssub.s32 1, %s7
  %s10 = scalar_select 0, %s9, %s7
  %11 = sst [smem:[#allocation2]] %s0
  $region1: #{tpu_custom_call.1} parent=0
    #allocation3 [shape = 'u8[8192]{0}', space=vmem, size = 0x2000, scoped, tag = 'input window, operand 1']
    #allocation4 [shape = 's32[2]{0}', space=sflag, size = 0x8, scoped, tag = 'scoped memory for tpu_custom_call.1']
    #allocation5 [shape = 's32[2]{0}', space=sflag, size = 0x8, scoped, tag = 'scoped memory for tpu_custom_call.1']
    #allocation6 [shape = 'u8[8192]{0}', space=vmem, size = 0x2000, scoped, tag = 'input window, operand 4, single buffered']
    #allocation7 [shape = 's32[1]{0}', space=sflag, size = 0x4, scoped, tag = 'scoped memory for tpu_custom_call.1']
    #allocation8 [shape = 'u8[8192]{0}', space=vmem, size = 0x2000, scoped, tag = 'output window, operand 0']
    %12 = vsyncpa [#allocation4], 0
    %s13 = scalar_lea.sflag [#allocation4], 1
    %14 = vsyncpa %s13, 0
    %15 = vsyncpa [#allocation7], 0
    %16 = vsyncpa [#allocation5], 0
    %s17 = scalar_lea.sflag [#allocation5], 1
    %18 = vsyncpa %s17, 0
    loop: start=0, step=1, limit=4
    $region2: #{tpu_custom_call.1} parent=1 // loop_pre_header
      _
    $region3: #{tpu_custom_call.1} parent=1 // loop_header
      %s20 = sphi 0, %s24
      %p21 = scmp.ge.s32.totalorder %s20, 4
      %s27 = sphi 0, %s39
      %s28 = sphi 0, %s35
      %s29 = sphi 0, %s27
      %s30 = sphi 0, %s28
      %s31 = sphi 0, %s29
      %s32 = sphi 0, %s30
      %s40 = sphi 0, %s40
      %s42 = sphi 0, %s40
      %s43 = sphi 0, %s42
      %s57 = sphi 0, %s43
      %s63 = sphi 0, %s65
      %s66 = sphi 0, %s63
      %s67 = sphi 0, %s66
      %s83 = sphi 0, %s67
      %s87 = sphi 0, %s87
      %s89 = sphi 0, %s87
      %s90 = sphi 0, %s89
      %s104 = sphi 0, %s90
      %s108 = sphi 0, %s108
      %s110 = sphi 0, %s108
      %s111 = sphi 0, %s110
      %s125 = sphi 0, %s111
      %s131 = sphi 0, %s133
      %s134 = sphi 0, %s131
      %s135 = sphi 0, %s134
      %s151 = sphi 0, %s135
      %s157 = sphi 0, %s159
      %s160 = sphi 0, %s157
      %s161 = sphi 0, %s160
      %s177 = sphi 0, %s161
      %s185 = sphi 0, %s187
      %s188 = sphi 0, %s185
      %s189 = sphi 0, %s188
      %s205 = sphi 0, %s189
    $region4: #{tpu_custom_call.1} parent=1 // loop_header_branch
      %23 = sbr.rel (%p21) target = $region8
    $region5: #{tpu_custom_call.1} parent=1 // loop_body
      %s25 = ssub.s32 %s20, 1
      %s26 = ssub.s32 %s20, 2
      %s33 = sadd.s32 1, %s28
      %p34 = scmp.ge.s32.totalorder %s33, 1
      %s35 = scalar_select %p34, 0, %s33
      %s36 = sadd.s32 1, %s27
      %s37 = scalar_select %p34, %s36, %s27
      %p38 = scmp.ge.s32.totalorder %s37, 2
      %s39 = scalar_select %p38, 0, %s37
      %s41 = sadd.s32 %s40, 1
      %p44 = scmp.eq.s32.totalorder %s20, 1
      %p45 = scmp.ne.s32.totalorder %s40, %s42
      %p46 = scmp.eq.s32.totalorder %s20, 0
      %p47 = por %p45, %p46
      %p48 = scmp.ne.s32.totalorder %s40, %s42
      %p49 = scmp.eq.s32.totalorder %s25, 1
      %p50 = por %p48, %p49
      %p51 = scmp.ne.s32.totalorder %s42, %s43
      %p52 = scmp.eq.s32.totalorder %s25, 0
      %p53 = por %p51, %p52
      %p54 = scmp.ne.s32.totalorder %s42, %s43
      %p55 = scmp.eq.s32.totalorder %s26, 1
      %p56 = por %p54, %p55
      %p58 = scmp.ne.s32.totalorder %s43, %s57
      %p59 = scmp.eq.s32.totalorder %s26, 0
      %p60 = por %p58, %p59
      %s61 = ssub.s32 %s27, %s39
      %p62 = scmp.eq.s32.totalorder %s61, 0
      %s64 = sadd.s32 %s63, 1
      %s65 = scalar_select %p62, %s63, %s64
      %p68 = pneg %p62
      %p69 = scmp.eq.s32.totalorder %s20, 1
      %p70 = por %p68, %p69
      %p71 = scmp.ne.s32.totalorder %s63, %s66
      %p72 = scmp.eq.s32.totalorder %s20, 0
      %p73 = por %p71, %p72
      %p74 = scmp.ne.s32.totalorder %s63, %s66
      %p75 = scmp.eq.s32.totalorder %s25, 1
      %p76 = por %p74, %p75
      %p77 = scmp.ne.s32.totalorder %s66, %s67
      %p78 = scmp.eq.s32.totalorder %s25, 0
      %p79 = por %p77, %p78
      %p80 = scmp.ne.s32.totalorder %s66, %s67
      %p81 = scmp.eq.s32.totalorder %s26, 1
      %p82 = por %p80, %p81
      %p84 = scmp.ne.s32.totalorder %s67, %s83
      %p85 = scmp.eq.s32.totalorder %s26, 0
      %p86 = por %p84, %p85
      %s88 = sadd.s32 %s87, 1
      %p91 = scmp.eq.s32.totalorder %s20, 1
      %p92 = scmp.ne.s32.totalorder %s87, %s89
      %p93 = scmp.eq.s32.totalorder %s20, 0
      %p94 = por %p92, %p93
      %p95 = scmp.ne.s32.totalorder %s87, %s89
      %p96 = scmp.eq.s32.totalorder %s25, 1
      %p97 = por %p95, %p96
      %p98 = scmp.ne.s32.totalorder %s89, %s90
      %p99 = scmp.eq.s32.totalorder %s25, 0
      %p100 = por %p98, %p99
      %p101 = scmp.ne.s32.totalorder %s89, %s90
      %p102 = scmp.eq.s32.totalorder %s26, 1
      %p103 = por %p101, %p102
      %p105 = scmp.ne.s32.totalorder %s90, %s104
      %p106 = scmp.eq.s32.totalorder %s26, 0
      %p107 = por %p105, %p106
      %s109 = sadd.s32 %s108, 1
      %p112 = scmp.eq.s32.totalorder %s20, 1
      %p113 = scmp.ne.s32.totalorder %s108, %s110
      %p114 = scmp.eq.s32.totalorder %s20, 0
      %p115 = por %p113, %p114
      %p116 = scmp.ne.s32.totalorder %s108, %s110
      %p117 = scmp.eq.s32.totalorder %s25, 1
      %p118 = por %p116, %p117
      %p119 = scmp.ne.s32.totalorder %s110, %s111
      %p120 = scmp.eq.s32.totalorder %s25, 0
      %p121 = por %p119, %p120
      %p122 = scmp.ne.s32.totalorder %s110, %s111
      %p123 = scmp.eq.s32.totalorder %s26, 1
      %p124 = por %p122, %p123
      %p126 = scmp.ne.s32.totalorder %s111, %s125
      %p127 = scmp.eq.s32.totalorder %s26, 0
      %p128 = por %p126, %p127
      %s129 = ssub.s32 %s28, %s35
      %p130 = scmp.eq.s32.totalorder %s129, 0
      %s132 = sadd.s32 %s131, 1
      %s133 = scalar_select %p130, %s131, %s132
      %p136 = pneg %p130
      %p137 = scmp.eq.s32.totalorder %s20, 1
      %p138 = por %p136, %p137
      %p139 = scmp.ne.s32.totalorder %s131, %s134
      %p140 = scmp.eq.s32.totalorder %s20, 0
      %p141 = por %p139, %p140
      %p142 = scmp.ne.s32.totalorder %s131, %s134
      %p143 = scmp.eq.s32.totalorder %s25, 1
      %p144 = por %p142, %p143
      %p145 = scmp.ne.s32.totalorder %s134, %s135
      %p146 = scmp.eq.s32.totalorder %s25, 0
      %p147 = por %p145, %p146
      %p148 = scmp.ne.s32.totalorder %s134, %s135
      %p149 = scmp.eq.s32.totalorder %s26, 1
      %p150 = por %p148, %p149
      %p152 = scmp.ne.s32.totalorder %s135, %s151
      %p153 = scmp.eq.s32.totalorder %s26, 0
      %p154 = por %p152, %p153
      %s155 = ssub.s32 %s28, %s35
      %p156 = scmp.eq.s32.totalorder %s155, 0
      %s158 = sadd.s32 %s157, 1
      %s159 = scalar_select %p156, %s157, %s158
      %p162 = pneg %p156
      %p163 = scmp.eq.s32.totalorder %s20, 1
      %p164 = por %p162, %p163
      %p165 = scmp.ne.s32.totalorder %s157, %s160
      %p166 = scmp.eq.s32.totalorder %s20, 0
      %p167 = por %p165, %p166
      %p168 = scmp.ne.s32.totalorder %s157, %s160
      %p169 = scmp.eq.s32.totalorder %s25, 1
      %p170 = por %p168, %p169
      %p171 = scmp.ne.s32.totalorder %s160, %s161
      %p172 = scmp.eq.s32.totalorder %s25, 0
      %p173 = por %p171, %p172
      %p174 = scmp.ne.s32.totalorder %s160, %s161
      %p175 = scmp.eq.s32.totalorder %s26, 1
      %p176 = por %p174, %p175
      %p178 = scmp.ne.s32.totalorder %s161, %s177
      %p179 = scmp.eq.s32.totalorder %s26, 0
      %p180 = por %p178, %p179
      %s181 = ssub.s32 %s27, %s39
      %s182 = ssub.s32 %s28, %s35
      %s183 = sor.u32 %s181, %s182
      %p184 = scmp.eq.s32.totalorder %s183, 0
      %s186 = sadd.s32 %s185, 1
      %s187 = scalar_select %p184, %s185, %s186
      %p190 = pneg %p184
      %p191 = scmp.eq.s32.totalorder %s20, 1
      %p192 = por %p190, %p191
      %p193 = scmp.ne.s32.totalorder %s185, %s188
      %p194 = scmp.eq.s32.totalorder %s20, 0
      %p195 = por %p193, %p194
      %p196 = scmp.ne.s32.totalorder %s185, %s188
      %p197 = scmp.eq.s32.totalorder %s25, 1
      %p198 = por %p196, %p197
      %p199 = scmp.ne.s32.totalorder %s188, %s189
      %p200 = scmp.eq.s32.totalorder %s25, 0
      %p201 = por %p199, %p200
      %p202 = scmp.ne.s32.totalorder %s188, %s189
      %p203 = scmp.eq.s32.totalorder %s26, 1
      %p204 = por %p202, %p203
      %p206 = scmp.ne.s32.totalorder %s189, %s205
      %p207 = scmp.eq.s32.totalorder %s26, 0
      %p208 = por %p206, %p207
      %p209 = scmp.le.s32.totalorder 1, %s20
      %p210 = scmp.lt.s32.totalorder %s20, 3
      %p211 = pnand %p209, %p210
      %p212 = pneg %p211
      // Predicated region
      $region9: #{tpu_custom_call.1} parent=5 // pred_check
        _
      $region10: #{tpu_custom_call.1} parent=5 // pred_check_branch
        %214 = sbr.rel (%p211) target = $region12
      $region11: #{tpu_custom_call.1} parent=5 // pred_region
        %s215 = ssub.s32 %s20, 1
        // Predicated region
        $region13: #{tpu_custom_call.1} parent=11 // pred_check
          %p216 = pneg %p53
        $region14: #{tpu_custom_call.1} parent=11 // pred_check_branch
          %218 = sbr.rel (%p216) target = $region16
        $region15: #{tpu_custom_call.1} parent=11 // pred_region
          _
        $region16: #{tpu_custom_call.1} parent=11 // pred_fallthru
          _
        // Predicated region
        $region17: #{tpu_custom_call.1} parent=11 // pred_check
          %p219 = pneg %p100
        $region18: #{tpu_custom_call.1} parent=11 // pred_check_branch
          %221 = sbr.rel (%p219) target = $region20
        $region19: #{tpu_custom_call.1} parent=11 // pred_region
          _
        $region20: #{tpu_custom_call.1} parent=11 // pred_fallthru
          _
        // Predicated region
        $region21: #{tpu_custom_call.1} parent=11 // pred_check
          %p222 = pneg %p121
        $region22: #{tpu_custom_call.1} parent=11 // pred_check_branch
          %224 = sbr.rel (%p222) target = $region24
        $region23: #{tpu_custom_call.1} parent=11 // pred_region
          _
        $region24: #{tpu_custom_call.1} parent=11 // pred_fallthru
          _
        // Predicated region
        $region25: #{tpu_custom_call.1} parent=11 // pred_check
          %p225 = pneg %p147
        $region26: #{tpu_custom_call.1} parent=11 // pred_check_branch
          %227 = sbr.rel (%p225) target = $region28
        $region27: #{tpu_custom_call.1} parent=11 // pred_region
          %229 = vsyncadd [#allocation7], 0
          %s230 = smul.addr %s30, 4
          %s231 = scalar_lea.hbm %s4, %s230
          %s232 = sshll.u32 %s231, 4
          %s233 = int_to_ptr.hbm [resolvable:$true] %s232
          %s234 = sshll.u32 [#allocation6], 4
          %s235 = int_to_ptr.vmem [resolvable:$true] %s234
          %240 = dma.hbm_to_vmem [thread:$0]  %s233, 256, %s235, [#allocation7], 64, 64, 4
        $region28: #{tpu_custom_call.1} parent=11 // pred_fallthru
          _
        // Predicated region
        $region29: #{tpu_custom_call.1} parent=11 // pred_check
          %p241 = pneg %p173
        $region30: #{tpu_custom_call.1} parent=11 // pred_check_branch
          %243 = sbr.rel (%p241) target = $region32
        $region31: #{tpu_custom_call.1} parent=11 // pred_region
          %p244 = scmp.lt.s32.totalorder %s30, 0
          %s245 = scalar_select %p244, %s30, 0
          %s246 = scalar_lea.vmem %s5, %s245
        $region32: #{tpu_custom_call.1} parent=11 // pred_fallthru
          _
      $region12: #{tpu_custom_call.1} parent=5 // pred_fallthru
        _
      %p247 = scmp.lt.s32.totalorder %s20, 2
      // Predicated region
      $region33: #{tpu_custom_call.1} parent=5 // pred_check
        %p248 = pneg %p247
      $region34: #{tpu_custom_call.1} parent=5 // pred_check_branch
        %250 = sbr.rel (%p248) target = $region36
      $region35: #{tpu_custom_call.1} parent=5 // pred_region
        // Predicated region
        $region37: #{tpu_custom_call.1} parent=35 // pred_check
          %p251 = pneg %p73
        $region38: #{tpu_custom_call.1} parent=35 // pred_check_branch
          %253 = sbr.rel (%p251) target = $region40
        $region39: #{tpu_custom_call.1} parent=35 // pred_region
          %s254 = sand.u32 %s63, 1
          %s255 = scalar_lea.sflag [#allocation4], %s254
          %s256 = sand.u32 %s63, 1
          %s257 = smul.addr %s256, 8
          %s258 = scalar_lea.vmem [#allocation3], %s257
          %260 = vsyncadd %s255, 0
          %s261 = smul.addr %s27, 8
          %s262 = scalar_lea.hbm %s1, %s261
          %s264 = sshll.u32 %s262, 4
          %s265 = int_to_ptr.hbm [resolvable:$true] %s264
          %s266 = sshll.u32 %s258, 4
          %s267 = int_to_ptr.vmem [resolvable:$true] %s266
          %269 = dma.hbm_to_vmem [thread:$0]  %s265, 128, %s267, %s255
        $region40: #{tpu_custom_call.1} parent=35 // pred_fallthru
          _
      $region36: #{tpu_custom_call.1} parent=5 // pred_fallthru
        _
      %p270 = scmp.le.s32.totalorder 1, %s20
      %p271 = scmp.lt.s32.totalorder %s20, 3
      %p272 = pnand %p270, %p271
      %p273 = pneg %p272
      // Predicated region
      $region41: #{tpu_custom_call.1} parent=5 // pred_check
        _
      $region42: #{tpu_custom_call.1} parent=5 // pred_check_branch
        %275 = sbr.rel (%p272) target = $region44
      $region43: #{tpu_custom_call.1} parent=5 // pred_region
        %s276 = ssub.s32 %s20, 1
        %s277 = sand.u32 %s66, 1
        %s278 = scalar_lea.sflag [#allocation4], %s277
        %s279 = sand.u32 %s66, 1
        %s280 = smul.addr %s279, 8
        %s281 = scalar_lea.vmem [#allocation3], %s280
        // Predicated region
        $region45: #{tpu_custom_call.1} parent=43 // pred_check
          %p282 = pneg %p79
        $region46: #{tpu_custom_call.1} parent=43 // pred_check_branch
          %284 = sbr.rel (%p282) target = $region48
        $region47: #{tpu_custom_call.1} parent=43 // pred_region
          %286 = dma.done %s278, 128
        $region48: #{tpu_custom_call.1} parent=43 // pred_fallthru
          _
        // Predicated region
        $region49: #{tpu_custom_call.1} parent=43 // pred_check
          %p287 = pneg %p147
        $region50: #{tpu_custom_call.1} parent=43 // pred_check_branch
          %289 = sbr.rel (%p287) target = $region52
        $region51: #{tpu_custom_call.1} parent=43 // pred_region
          %291 = dma.done [#allocation7], 256
        $region52: #{tpu_custom_call.1} parent=43 // pred_fallthru
          _
        %p292 = pneg %p53
        %p293 = pneg %p50
        %s294 = sand.u32 %s66, 1
        %s295 = scalar_lea.sflag [#allocation4], %s294
        %s296 = sand.u32 %s66, 1
        %s297 = smul.addr %s296, 8
        %s298 = scalar_lea.vmem [#allocation3], %s297
        %p299 = pneg %p79
        %p300 = pneg %p76
        %p301 = pneg %p100
        %p302 = pneg %p97
        %p303 = pneg %p121
        %p304 = pneg %p118
        %p305 = pneg %p147
        %p306 = pneg %p144
        %p307 = scmp.lt.s32.totalorder %s30, 0
        %s308 = scalar_select %p307, %s30, 0
        %s309 = scalar_lea.vmem %s5, %s308
        %p310 = pneg %p173
        %p311 = pneg %p170
        %p312 = pneg %p201
        %p313 = pneg %p198
        %s314 = sand.u32 %s188, 1
        %s315 = scalar_lea.sflag [#allocation5], %s314
        %s316 = sand.u32 %s188, 1
        %s317 = smul.addr %s316, 8
        %s318 = scalar_lea.vmem [#allocation8], %s317
        %p319 = scmp.lt.s32.totalorder %s30, 0
        %s320 = scalar_select %p319, %s30, 0
        %s321 = scalar_lea.vmem %s5, %s320
        %v323 = vld [vmem:[%s281] sm:$0xff]
        %v324 = vld [vmem:[%s2] sm:$0x1]
        %v325 = vld [vmem:[%s3] sm:$0x1]
        %vm326 = vcmask 261120
        %v327 = vsel %vm326, %v323, 0.0
        %328 = vadd.xlane.f32.xlu0 %v327
        %v329 = vpop.xlane.xlu0 %328
        %v330 = vrcp.pop 32.0
        %v331 = vmul.f32 32.0, %v330
        %v332 = vsub.f32 1.0, %v331
        %v333 = vmul.f32 %v330, %v332
        %v334 = vadd.f32 %v330, %v333
        %vm335 = vweird.f32 %v330
        %v336 = vsel %vm335, %v330, %v334
        %v337 = vmul.f32 %v329, %v336
        %v338 = vsub.f32 %v323, %v337
        %v339 = vmul.f32 %v338, %v338
        %v340 = vsel %vm326, %v339, 0.0
        %341 = vadd.xlane.f32.xlu0 %v340
        %v342 = vpop.xlane.xlu0 %341
        %v343 = vmul.f32 %v342, 0.032258064
        %v344 = vrsqrt.pop %v343
        %v345 = vmul.f32 %v344, %v343
        %v346 = vmul.f32 %v345, %v344
        %v347 = vmul.f32 0.5, %v346
        %v348 = vsub.f32 1.5, %v347
        %v349 = vmul.f32 %v344, %v348
        %v350 = vmul.f32 %v343, %v349
        %vm351 = vcmp.eq.f32.partialorder %v343, inf
        %v352 = vsel %vm351, %v343, %v350
        %vm353 = vcmp.eq.f32.partialorder %v343, 0.0
        %v354 = vand.u32 %v343, 2147483648
        %v355 = vsel %vm353, %v354, %v352
        %v356 = vadd.f32 %v355, 1e-06
        %v357 = vrcp.pop %v356
        %v358 = vmul.f32 %v338, %v357
        %v360 = vperm.slane %v324, 0
        %v362 = vmul.f32 %v360, %v358
        %v364 = vperm.slane %v325, 0
        %v366 = vadd.f32 %v362, %v364
        %v367 = vpack.c.bf16 %v366, %v366
        %v368 = vld [vmem:[#allocation6] sm:$0xf]
        %v369 = vld [vmem:[#allocation6 + $0x4] sm:$0xf]
        %v370 = vld [vmem:[#allocation6 + $0x8] sm:$0xf]
        %v371 = vld [vmem:[#allocation6 + $0xc] sm:$0xf]
        %v372 = vld [vmem:[%s321] sm:$0x1]
        %v374 = vperm.slane %v372, 0
        %v380 = vunpack.c.l.b16 %v368
        %v381 = vunpack.c.l.b16 %v369
        %v382 = vunpack.c.l.b16 %v370
        %v383 = vunpack.c.l.b16 %v371
        %v384 = vpack.c.b16 %v381, %v380
        %v385 = vpack.c.b16 %v383, %v382
        %v389 = vsel %vm326, %v367, 0
        %391 = vmatpush.bf16.msra.mxu0 0
        %392 = vmatpush.bf16.msra.mxu0 0
        %393 = vmatpush.bf16.msra.mxu0 0
        %394 = vmatpush.bf16.msra.mxu0 0
        %395 = vmatpush.bf16.msra.mxu0 0
        %396 = vmatpush.bf16.msra.mxu0 0
        %397 = vmatpush.bf16.msra.mxu0 %v385
        %398 = vmatpush.bf16.msra.mxu0 %v384
        %399 = vmatmul.bf16.gmra.mxu0 %v389
        %v400 = vpop.f32.mrf.mxu0
        %v401 = vadd.f32 %v374, %v400
        %v402 = vpop.f32.mrf.mxu0
        %403 = vdwg.mxu0
        %v404 = vadd.f32 %v323, %v401
        %405 = vst.msk [vmem:[%s318] sm:$0xff] %vm326, %v404
        %s406 = sand.u32 %s188, 1
        %s407 = scalar_lea.sflag [#allocation5], %s406
        %s408 = sand.u32 %s188, 1
        %s409 = smul.addr %s408, 8
        %s410 = scalar_lea.vmem [#allocation8], %s409
        // Predicated region
        $region53: #{tpu_custom_call.1} parent=43 // pred_check
          %p411 = pneg %p198
        $region54: #{tpu_custom_call.1} parent=43 // pred_check_branch
          %413 = sbr.rel (%p411) target = $region56
        $region55: #{tpu_custom_call.1} parent=43 // pred_region
          %415 = vsyncadd %s407, 0
          %s416 = sadd.s32 %s30, %s29
          %s417 = smul.addr %s416, 8
          %s418 = scalar_lea.hbm %s6, %s417
          %s420 = sshll.u32 %s410, 4
          %s421 = int_to_ptr.vmem [resolvable:$true] %s420
          %s422 = sshll.u32 %s418, 4
          %s423 = int_to_ptr.hbm [resolvable:$true] %s422
          %425 = dma.vmem_to_hbm [thread:$0]  %s421, 128, %s423, %s407
        $region56: #{tpu_custom_call.1} parent=43 // pred_fallthru
          _
      $region44: #{tpu_custom_call.1} parent=5 // pred_fallthru
        _
      %p426 = scmp.le.s32.totalorder 2, %s20
      // Predicated region
      $region57: #{tpu_custom_call.1} parent=5 // pred_check
        %p427 = pneg %p426
      $region58: #{tpu_custom_call.1} parent=5 // pred_check_branch
        %429 = sbr.rel (%p427) target = $region60
      $region59: #{tpu_custom_call.1} parent=5 // pred_region
        %s430 = ssub.s32 %s20, 2
        // Predicated region
        $region61: #{tpu_custom_call.1} parent=59 // pred_check
          %p431 = pneg %p204
        $region62: #{tpu_custom_call.1} parent=59 // pred_check_branch
          %433 = sbr.rel (%p431) target = $region64
        $region63: #{tpu_custom_call.1} parent=59 // pred_region
          %s434 = sand.u32 %s189, 1
          %s435 = scalar_lea.sflag [#allocation5], %s434
          %s436 = sand.u32 %s189, 1
          %s437 = smul.addr %s436, 8
          %s438 = scalar_lea.vmem [#allocation8], %s437
          %440 = dma.done %s435, 128
        $region64: #{tpu_custom_call.1} parent=59 // pred_fallthru
          _
      $region60: #{tpu_custom_call.1} parent=5 // pred_fallthru
        _
    $region6: #{tpu_custom_call.1} parent=1 // loop_footer
      %s24 = sadd.s32 1, %s20
    $region7: #{tpu_custom_call.1} parent=1 // loop_footer_branch
      %19 = sbr.rel target = $region3
    $region8: #{tpu_custom_call.1} parent=1 // loop_exit
      _
    %441 = vsyncpa [#allocation4], 1
    %s442 = scalar_lea.sflag [#allocation4], 1
    %443 = vsyncpa %s442, 1
    %444 = vsyncpa [#allocation7], 1
    %445 = vsyncpa [#allocation5], 1
    %s446 = scalar_lea.sflag [#allocation5], 1
    %447 = vsyncpa %s446, 1

// kernel: tpu_custom_call.1
$region0: #{tpu_custom_call.1}
  #allocation0 [shape = 'u32[]', space=smem, size = 0x4, offset = 0x4, fixed_abs, tag = 'smem constant byte address 0x4 - core index']
  #allocation1 [shape = 'u32[72,128]{1,0:T(1,128)}', space=vmem, size = 0x9000, scoped, tag = 'internal scratch']
  #allocation2 [shape = 's32[1]{0:T(128)S(6)}', space=smem, size = 0x200, scoped, tag = 'scoped memory for tpu_custom_call.1']
  %s0 = inlined_call_operand.<no memory space> [shape: s32[1], index: 0, kind: input, shape index: {}]
  %s1 = inlined_call_operand.hbm [shape: f32[16,32], index: 1, kind: input, shape index: {}]
  %s2 = inlined_call_operand.vmem [shape: f32[1,32], index: 2, kind: input, shape index: {}]
  %s3 = inlined_call_operand.vmem [shape: f32[1,32], index: 3, kind: input, shape index: {}]
  %s4 = inlined_call_operand.hbm [shape: bf16[32,32], index: 4, kind: input, shape index: {}]
  %s5 = inlined_call_operand.vmem [shape: f32[1,32], index: 5, kind: input, shape index: {}]
  %s6 = inlined_call_operand.hbm [shape: f32[16,32], index: 6, kind: output, shape index: {}]
  %s7 = sld [smem:[#allocation0]]
  $region65: #{tpu_custom_call.1} parent=0
    _
  %s9 = ssub.s32 1, %s7
  %s10 = scalar_select 0, %s9, %s7
  %11 = sst [smem:[#allocation2]] %s0
  $region1: #{tpu_custom_call.1} parent=0
    #allocation3 [shape = 'u8[8192]{0}', space=vmem, size = 0x2000, scoped, tag = 'input window, operand 1']
    #allocation4 [shape = 's32[2]{0}', space=sflag, size = 0x8, scoped, tag = 'scoped memory for tpu_custom_call.1']
    #allocation5 [shape = 's32[2]{0}', space=sflag, size = 0x8, scoped, tag = 'scoped memory for tpu_custom_call.1']
    #allocation6 [shape = 'u8[8192]{0}', space=vmem, size = 0x2000, scoped, tag = 'input window, operand 4, single buffered']
    #allocation7 [shape = 's32[1]{0}', space=sflag, size = 0x4, scoped, tag = 'scoped memory for tpu_custom_call.1']
    #allocation8 [shape = 'u8[8192]{0}', space=vmem, size = 0x2000, scoped, tag = 'output window, operand 0']
    %12 = vsyncpa [#allocation4], 0
    %s13 = scalar_lea.sflag [#allocation4], 1
    %14 = vsyncpa %s13, 0
    %15 = vsyncpa [#allocation7], 0
    %16 = vsyncpa [#allocation5], 0
    %s17 = scalar_lea.sflag [#allocation5], 1
    %18 = vsyncpa %s17, 0
    loop: start=0, step=1, limit=4
    $region2: #{tpu_custom_call.1} parent=1 // loop_pre_header
      _
    $region3: #{tpu_custom_call.1} parent=1 // loop_header
      %s20 = sphi 0, %s24
      %p21 = scmp.ge.s32.totalorder %s20, 4
      %s27 = sphi 0, %s39
      %s28 = sphi 0, %s35
      %s29 = sphi 0, %s27
      %s30 = sphi 0, %s28
      %s31 = sphi 0, %s29
      %s32 = sphi 0, %s30
      %s40 = sphi 0, %s40
      %s42 = sphi 0, %s40
      %s43 = sphi 0, %s42
      %s57 = sphi 0, %s43
      %s63 = sphi 0, %s65
      %s66 = sphi 0, %s63
      %s67 = sphi 0, %s66
      %s83 = sphi 0, %s67
      %s87 = sphi 0, %s87
      %s89 = sphi 0, %s87
      %s90 = sphi 0, %s89
      %s104 = sphi 0, %s90
      %s108 = sphi 0, %s108
      %s110 = sphi 0, %s108
      %s111 = sphi 0, %s110
      %s125 = sphi 0, %s111
      %s131 = sphi 0, %s133
      %s134 = sphi 0, %s131
      %s135 = sphi 0, %s134
      %s151 = sphi 0, %s135
      %s157 = sphi 0, %s159
      %s160 = sphi 0, %s157
      %s161 = sphi 0, %s160
      %s177 = sphi 0, %s161
      %s185 = sphi 0, %s187
      %s188 = sphi 0, %s185
      %s189 = sphi 0, %s188
      %s205 = sphi 0, %s189
    $region4: #{tpu_custom_call.1} parent=1 // loop_header_branch
      %23 = sbr.rel (%p21) target = $region8
    $region5: #{tpu_custom_call.1} parent=1 // loop_body
      %s25 = ssub.s32 %s20, 1
      %s26 = ssub.s32 %s20, 2
      %s33 = sadd.s32 1, %s28
      %p34 = scmp.ge.s32.totalorder %s33, 1
      %s35 = scalar_select %p34, 0, %s33
      %s36 = sadd.s32 1, %s27
      %s37 = scalar_select %p34, %s36, %s27
      %p38 = scmp.ge.s32.totalorder %s37, 2
      %s39 = scalar_select %p38, 0, %s37
      %s41 = sadd.s32 %s40, 1
      %p44 = scmp.eq.s32.totalorder %s20, 1
      %p45 = scmp.ne.s32.totalorder %s40, %s42
      %p46 = scmp.eq.s32.totalorder %s20, 0
      %p47 = por %p45, %p46
      %p48 = scmp.ne.s32.totalorder %s40, %s42
      %p49 = scmp.eq.s32.totalorder %s25, 1
      %p50 = por %p48, %p49
      %p51 = scmp.ne.s32.totalorder %s42, %s43
      %p52 = scmp.eq.s32.totalorder %s25, 0
      %p53 = por %p51, %p52
      %p54 = scmp.ne.s32.totalorder %s42, %s43
      %p55 = scmp.eq.s32.totalorder %s26, 1
      %p56 = por %p54, %p55
      %p58 = scmp.ne.s32.totalorder %s43, %s57
      %p59 = scmp.eq.s32.totalorder %s26, 0
      %p60 = por %p58, %p59
      %s61 = ssub.s32 %s27, %s39
      %p62 = scmp.eq.s32.totalorder %s61, 0
      %s64 = sadd.s32 %s63, 1
      %s65 = scalar_select %p62, %s63, %s64
      %p68 = pneg %p62
      %p69 = scmp.eq.s32.totalorder %s20, 1
      %p70 = por %p68, %p69
      %p71 = scmp.ne.s32.totalorder %s63, %s66
      %p72 = scmp.eq.s32.totalorder %s20, 0
      %p73 = por %p71, %p72
      %p74 = scmp.ne.s32.totalorder %s63, %s66
      %p75 = scmp.eq.s32.totalorder %s25, 1
      %p76 = por %p74, %p75
      %p77 = scmp.ne.s32.totalorder %s66, %s67
      %p78 = scmp.eq.s32.totalorder %s25, 0
      %p79 = por %p77, %p78
      %p80 = scmp.ne.s32.totalorder %s66, %s67
      %p81 = scmp.eq.s32.totalorder %s26, 1
      %p82 = por %p80, %p81
      %p84 = scmp.ne.s32.totalorder %s67, %s83
      %p85 = scmp.eq.s32.totalorder %s26, 0
      %p86 = por %p84, %p85
      %s88 = sadd.s32 %s87, 1
      %p91 = scmp.eq.s32.totalorder %s20, 1
      %p92 = scmp.ne.s32.totalorder %s87, %s89
      %p93 = scmp.eq.s32.totalorder %s20, 0
      %p94 = por %p92, %p93
      %p95 = scmp.ne.s32.totalorder %s87, %s89
      %p96 = scmp.eq.s32.totalorder %s25, 1
      %p97 = por %p95, %p96
      %p98 = scmp.ne.s32.totalorder %s89, %s90
      %p99 = scmp.eq.s32.totalorder %s25, 0
      %p100 = por %p98, %p99
      %p101 = scmp.ne.s32.totalorder %s89, %s90
      %p102 = scmp.eq.s32.totalorder %s26, 1
      %p103 = por %p101, %p102
      %p105 = scmp.ne.s32.totalorder %s90, %s104
      %p106 = scmp.eq.s32.totalorder %s26, 0
      %p107 = por %p105, %p106
      %s109 = sadd.s32 %s108, 1
      %p112 = scmp.eq.s32.totalorder %s20, 1
      %p113 = scmp.ne.s32.totalorder %s108, %s110
      %p114 = scmp.eq.s32.totalorder %s20, 0
      %p115 = por %p113, %p114
      %p116 = scmp.ne.s32.totalorder %s108, %s110
      %p117 = scmp.eq.s32.totalorder %s25, 1
      %p118 = por %p116, %p117
      %p119 = scmp.ne.s32.totalorder %s110, %s111
      %p120 = scmp.eq.s32.totalorder %s25, 0
      %p121 = por %p119, %p120
      %p122 = scmp.ne.s32.totalorder %s110, %s111
      %p123 = scmp.eq.s32.totalorder %s26, 1
      %p124 = por %p122, %p123
      %p126 = scmp.ne.s32.totalorder %s111, %s125
      %p127 = scmp.eq.s32.totalorder %s26, 0
      %p128 = por %p126, %p127
      %s129 = ssub.s32 %s28, %s35
      %p130 = scmp.eq.s32.totalorder %s129, 0
      %s132 = sadd.s32 %s131, 1
      %s133 = scalar_select %p130, %s131, %s132
      %p136 = pneg %p130
      %p137 = scmp.eq.s32.totalorder %s20, 1
      %p138 = por %p136, %p137
      %p139 = scmp.ne.s32.totalorder %s131, %s134
      %p140 = scmp.eq.s32.totalorder %s20, 0
      %p141 = por %p139, %p140
      %p142 = scmp.ne.s32.totalorder %s131, %s134
      %p143 = scmp.eq.s32.totalorder %s25, 1
      %p144 = por %p142, %p143
      %p145 = scmp.ne.s32.totalorder %s134, %s135
      %p146 = scmp.eq.s32.totalorder %s25, 0
      %p147 = por %p145, %p146
      %p148 = scmp.ne.s32.totalorder %s134, %s135
      %p149 = scmp.eq.s32.totalorder %s26, 1
      %p150 = por %p148, %p149
      %p152 = scmp.ne.s32.totalorder %s135, %s151
      %p153 = scmp.eq.s32.totalorder %s26, 0
      %p154 = por %p152, %p153
      %s155 = ssub.s32 %s28, %s35
      %p156 = scmp.eq.s32.totalorder %s155, 0
      %s158 = sadd.s32 %s157, 1
      %s159 = scalar_select %p156, %s157, %s158
      %p162 = pneg %p156
      %p163 = scmp.eq.s32.totalorder %s20, 1
      %p164 = por %p162, %p163
      %p165 = scmp.ne.s32.totalorder %s157, %s160
      %p166 = scmp.eq.s32.totalorder %s20, 0
      %p167 = por %p165, %p166
      %p168 = scmp.ne.s32.totalorder %s157, %s160
      %p169 = scmp.eq.s32.totalorder %s25, 1
      %p170 = por %p168, %p169
      %p171 = scmp.ne.s32.totalorder %s160, %s161
      %p172 = scmp.eq.s32.totalorder %s25, 0
      %p173 = por %p171, %p172
      %p174 = scmp.ne.s32.totalorder %s160, %s161
      %p175 = scmp.eq.s32.totalorder %s26, 1
      %p176 = por %p174, %p175
      %p178 = scmp.ne.s32.totalorder %s161, %s177
      %p179 = scmp.eq.s32.totalorder %s26, 0
      %p180 = por %p178, %p179
      %s181 = ssub.s32 %s27, %s39
      %s182 = ssub.s32 %s28, %s35
      %s183 = sor.u32 %s181, %s182
      %p184 = scmp.eq.s32.totalorder %s183, 0
      %s186 = sadd.s32 %s185, 1
      %s187 = scalar_select %p184, %s185, %s186
      %p190 = pneg %p184
      %p191 = scmp.eq.s32.totalorder %s20, 1
      %p192 = por %p190, %p191
      %p193 = scmp.ne.s32.totalorder %s185, %s188
      %p194 = scmp.eq.s32.totalorder %s20, 0
      %p195 = por %p193, %p194
      %p196 = scmp.ne.s32.totalorder %s185, %s188
      %p197 = scmp.eq.s32.totalorder %s25, 1
      %p198 = por %p196, %p197
      %p199 = scmp.ne.s32.totalorder %s188, %s189
      %p200 = scmp.eq.s32.totalorder %s25, 0
      %p201 = por %p199, %p200
      %p202 = scmp.ne.s32.totalorder %s188, %s189
      %p203 = scmp.eq.s32.totalorder %s26, 1
      %p204 = por %p202, %p203
      %p206 = scmp.ne.s32.totalorder %s189, %s205
      %p207 = scmp.eq.s32.totalorder %s26, 0
      %p208 = por %p206, %p207
      %p209 = scmp.le.s32.totalorder 1, %s20
      %p210 = scmp.lt.s32.totalorder %s20, 3
      %p211 = pnand %p209, %p210
      %p212 = pneg %p211
      // Predicated region
      $region9: #{tpu_custom_call.1} parent=5 // pred_check
        _
      $region10: #{tpu_custom_call.1} parent=5 // pred_check_branch
        %214 = sbr.rel (%p211) target = $region12
      $region11: #{tpu_custom_call.1} parent=5 // pred_region
        %s215 = ssub.s32 %s20, 1
        // Predicated region
        $region13: #{tpu_custom_call.1} parent=11 // pred_check
          %p216 = pneg %p53
        $region14: #{tpu_custom_call.1} parent=11 // pred_check_branch
          %218 = sbr.rel (%p216) target = $region16
        $region15: #{tpu_custom_call.1} parent=11 // pred_region
          _
        $region16: #{tpu_custom_call.1} parent=11 // pred_fallthru
          _
        // Predicated region
        $region17: #{tpu_custom_call.1} parent=11 // pred_check
          %p219 = pneg %p100
        $region18: #{tpu_custom_call.1} parent=11 // pred_check_branch
          %221 = sbr.rel (%p219) target = $region20
        $region19: #{tpu_custom_call.1} parent=11 // pred_region
          _
        $region20: #{tpu_custom_call.1} parent=11 // pred_fallthru
          _
        // Predicated region
        $region21: #{tpu_custom_call.1} parent=11 // pred_check
          %p222 = pneg %p121
        $region22: #{tpu_custom_call.1} parent=11 // pred_check_branch
          %224 = sbr.rel (%p222) target = $region24
        $region23: #{tpu_custom_call.1} parent=11 // pred_region
          _
        $region24: #{tpu_custom_call.1} parent=11 // pred_fallthru
          _
        // Predicated region
        $region25: #{tpu_custom_call.1} parent=11 // pred_check
          %p225 = pneg %p147
        $region26: #{tpu_custom_call.1} parent=11 // pred_check_branch
          %227 = sbr.rel (%p225) target = $region28
        $region27: #{tpu_custom_call.1} parent=11 // pred_region
          %229 = vsyncadd [#allocation7], 0
          %s230 = smul.addr %s30, 4
          %s231 = scalar_lea.hbm %s4, %s230
          %s232 = sshll.u32 %s231, 4
          %s233 = int_to_ptr.hbm [resolvable:$true] %s232
          %s234 = sshll.u32 [#allocation6], 4
          %s235 = int_to_ptr.vmem [resolvable:$true] %s234
          %240 = dma.hbm_to_vmem [thread:$0]  %s233, 256, %s235, [#allocation7], 64, 64, 4
        $region28: #{tpu_custom_call.1} parent=11 // pred_fallthru
          _
        // Predicated region
        $region29: #{tpu_custom_call.1} parent=11 // pred_check
          %p241 = pneg %p173
        $region30: #{tpu_custom_call.1} parent=11 // pred_check_branch
          %243 = sbr.rel (%p241) target = $region32
        $region31: #{tpu_custom_call.1} parent=11 // pred_region
          %p244 = scmp.lt.s32.totalorder %s30, 0
          %s245 = scalar_select %p244, %s30, 0
          %s246 = scalar_lea.vmem %s5, %s245
        $region32: #{tpu_custom_call.1} parent=11 // pred_fallthru
          _
      $region12: #{tpu_custom_call.1} parent=5 // pred_fallthru
        _
      %p247 = scmp.lt.s32.totalorder %s20, 2
      // Predicated region
      $region33: #{tpu_custom_call.1} parent=5 // pred_check
        %p248 = pneg %p247
      $region34: #{tpu_custom_call.1} parent=5 // pred_check_branch
        %250 = sbr.rel (%p248) target = $region36
      $region35: #{tpu_custom_call.1} parent=5 // pred_region
        // Predicated region
        $region37: #{tpu_custom_call.1} parent=35 // pred_check
          %p251 = pneg %p73
        $region38: #{tpu_custom_call.1} parent=35 // pred_check_branch
          %253 = sbr.rel (%p251) target = $region40
        $region39: #{tpu_custom_call.1} parent=35 // pred_region
          %s254 = sand.u32 %s63, 1
          %s255 = scalar_lea.sflag [#allocation4], %s254
          %s256 = sand.u32 %s63, 1
          %s257 = smul.addr %s256, 8
          %s258 = scalar_lea.vmem [#allocation3], %s257
          %260 = vsyncadd %s255, 0
          %s261 = smul.addr %s27, 8
          %s262 = scalar_lea.hbm %s1, %s261
          %s264 = sshll.u32 %s262, 4
          %s265 = int_to_ptr.hbm [resolvable:$true] %s264
          %s266 = sshll.u32 %s258, 4
          %s267 = int_to_ptr.vmem [resolvable:$true] %s266
          %269 = dma.hbm_to_vmem [thread:$0]  %s265, 128, %s267, %s255
        $region40: #{tpu_custom_call.1} parent=35 // pred_fallthru
          _
      $region36: #{tpu_custom_call.1} parent=5 // pred_fallthru
        _
      %p270 = scmp.le.s32.totalorder 1, %s20
      %p271 = scmp.lt.s32.totalorder %s20, 3
      %p272 = pnand %p270, %p271
      %p273 = pneg %p272
      // Predicated region
      $region41: #{tpu_custom_call.1} parent=5 // pred_check
        _
      $region42: #{tpu_custom_call.1} parent=5 // pred_check_branch
        %275 = sbr.rel (%p272) target = $region44
      $region43: #{tpu_custom_call.1} parent=5 // pred_region
        %s276 = ssub.s32 %s20, 1
        %s277 = sand.u32 %s66, 1
        %s278 = scalar_lea.sflag [#allocation4], %s277
        %s279 = sand.u32 %s66, 1
        %s280 = smul.addr %s279, 8
        %s281 = scalar_lea.vmem [#allocation3], %s280
        // Predicated region
        $region45: #{tpu_custom_call.1} parent=43 // pred_check
          %p282 = pneg %p79
        $region46: #{tpu_custom_call.1} parent=43 // pred_check_branch
          %284 = sbr.rel (%p282) target = $region48
        $region47: #{tpu_custom_call.1} parent=43 // pred_region
          %286 = dma.done %s278, 128
        $region48: #{tpu_custom_call.1} parent=43 // pred_fallthru
          _
        // Predicated region
        $region49: #{tpu_custom_call.1} parent=43 // pred_check
          %p287 = pneg %p147
        $region50: #{tpu_custom_call.1} parent=43 // pred_check_branch
          %289 = sbr.rel (%p287) target = $region52
        $region51: #{tpu_custom_call.1} parent=43 // pred_region
          %291 = dma.done [#allocation7], 256
        $region52: #{tpu_custom_call.1} parent=43 // pred_fallthru
          _
        %p292 = pneg %p53
        %p293 = pneg %p50
        %s294 = sand.u32 %s66, 1
        %s295 = scalar_lea.sflag [#allocation4], %s294
        %s296 = sand.u32 %s66, 1
        %s297 = smul.addr %s296, 8
        %s298 = scalar_lea.vmem [#allocation3], %s297
        %p299 = pneg %p79
        %p300 = pneg %p76
        %p301 = pneg %p100
        %p302 = pneg %p97
        %p303 = pneg %p121
        %p304 = pneg %p118
        %p305 = pneg %p147
        %p306 = pneg %p144
        %p307 = scmp.lt.s32.totalorder %s30, 0
        %s308 = scalar_select %p307, %s30, 0
        %s309 = scalar_lea.vmem %s5, %s308
        %p310 = pneg %p173
        %p311 = pneg %p170
        %p312 = pneg %p201
        %p313 = pneg %p198
        %s314 = sand.u32 %s188, 1
        %s315 = scalar_lea.sflag [#allocation5], %s314
        %s316 = sand.u32 %s188, 1
        %s317 = smul.addr %s316, 8
        %s318 = scalar_lea.vmem [#allocation8], %s317
        %p319 = scmp.lt.s32.totalorder %s30, 0
        %s320 = scalar_select %p319, %s30, 0
        %s321 = scalar_lea.vmem %s5, %s320
        %v323 = vld [vmem:[%s281] sm:$0xff]
        %v324 = vld [vmem:[%s2] sm:$0x1]
        %v325 = vld [vmem:[%s3] sm:$0x1]
        %vm326 = vcmask 261120
        %v327 = vsel %vm326, %v323, 0.0
        %328 = vadd.xlane.f32.xlu0 %v327
        %v329 = vpop.xlane.xlu0 %328
        %v330 = vrcp.pop 32.0
        %v331 = vmul.f32 32.0, %v330
        %v332 = vsub.f32 1.0, %v331
        %v333 = vmul.f32 %v330, %v332
        %v334 = vadd.f32 %v330, %v333
        %vm335 = vweird.f32 %v330
        %v336 = vsel %vm335, %v330, %v334
        %v337 = vmul.f32 %v329, %v336
        %v338 = vsub.f32 %v323, %v337
        %v339 = vmul.f32 %v338, %v338
        %v340 = vsel %vm326, %v339, 0.0
        %341 = vadd.xlane.f32.xlu0 %v340
        %v342 = vpop.xlane.xlu0 %341
        %v343 = vmul.f32 %v342, 0.032258064
        %v344 = vrsqrt.pop %v343
        %v345 = vmul.f32 %v344, %v343
        %v346 = vmul.f32 %v345, %v344
        %v347 = vmul.f32 0.5, %v346
        %v348 = vsub.f32 1.5, %v347
        %v349 = vmul.f32 %v344, %v348
        %v350 = vmul.f32 %v343, %v349
        %vm351 = vcmp.eq.f32.partialorder %v343, inf
        %v352 = vsel %vm351, %v343, %v350
        %vm353 = vcmp.eq.f32.partialorder %v343, 0.0
        %v354 = vand.u32 %v343, 2147483648
        %v355 = vsel %vm353, %v354, %v352
        %v356 = vadd.f32 %v355, 1e-06
        %v357 = vrcp.pop %v356
        %v358 = vmul.f32 %v338, %v357
        %v360 = vperm.slane %v324, 0
        %v362 = vmul.f32 %v360, %v358
        %v364 = vperm.slane %v325, 0
        %v366 = vadd.f32 %v362, %v364
        %v367 = vpack.c.bf16 %v366, %v366
        %v368 = vld [vmem:[#allocation6] sm:$0xf]
        %v369 = vld [vmem:[#allocation6 + $0x4] sm:$0xf]
        %v370 = vld [vmem:[#allocation6 + $0x8] sm:$0xf]
        %v371 = vld [vmem:[#allocation6 + $0xc] sm:$0xf]
        %v372 = vld [vmem:[%s321] sm:$0x1]
        %v374 = vperm.slane %v372, 0
        %v380 = vunpack.c.l.b16 %v368
        %v381 = vunpack.c.l.b16 %v369
        %v382 = vunpack.c.l.b16 %v370
        %v383 = vunpack.c.l.b16 %v371
        %v384 = vpack.c.b16 %v381, %v380
        %v385 = vpack.c.b16 %v383, %v382
        %v389 = vsel %vm326, %v367, 0
        %391 = vmatpush.bf16.msra.mxu0 0
        %392 = vmatpush.bf16.msra.mxu0 0
        %393 = vmatpush.bf16.msra.mxu0 0
        %394 = vmatpush.bf16.msra.mxu0 0
        %395 = vmatpush.bf16.msra.mxu0 0
        %396 = vmatpush.bf16.msra.mxu0 0
        %397 = vmatpush.bf16.msra.mxu0 %v385
        %398 = vmatpush.bf16.msra.mxu0 %v384
        %399 = vmatmul.bf16.gmra.mxu0 %v389
        %v400 = vpop.f32.mrf.mxu0
        %v401 = vadd.f32 %v374, %v400
        %v402 = vpop.f32.mrf.mxu0
        %403 = vdwg.mxu0
        %v404 = vadd.f32 %v323, %v401
        %405 = vst.msk [vmem:[%s318] sm:$0xff] %vm326, %v404
        %s406 = sand.u32 %s188, 1
        %s407 = scalar_lea.sflag [#allocation5], %s406
        %s408 = sand.u32 %s188, 1
        %s409 = smul.addr %s408, 8
        %s410 = scalar_lea.vmem [#allocation8], %s409
        // Predicated region
        $region53: #{tpu_custom_call.1} parent=43 // pred_check
          %p411 = pneg %p198
        $region54: #{tpu_custom_call.1} parent=43 // pred_check_branch
          %413 = sbr.rel (%p411) target = $region56
        $region55: #{tpu_custom_call.1} parent=43 // pred_region
          %415 = vsyncadd %s407, 0
          %s416 = sadd.s32 %s30, %s29
          %s417 = smul.addr %s416, 8
          %s418 = scalar_lea.hbm %s6, %s417
          %s420 = sshll.u32 %s410, 4
          %s421 = int_to_ptr.vmem [resolvable:$true] %s420
          %s422 = sshll.u32 %s418, 4
          %s423 = int_to_ptr.hbm [resolvable:$true] %s422
          %425 = dma.vmem_to_hbm [thread:$0]  %s421, 128, %s423, %s407
        $region56: #{tpu_custom_call.1} parent=43 // pred_fallthru
          _
      $region44: #{tpu_custom_call.1} parent=5 // pred_fallthru
        _
      %p426 = scmp.le.s32.totalorder 2, %s20
      // Predicated region
      $region57: #{tpu_custom_call.1} parent=5 // pred_check
        %p427 = pneg %p426
      $region58: #{tpu_custom_call.1} parent=5 // pred_check_branch
        %429 = sbr.rel (%p427) target = $region60
      $region59: #{tpu_custom_call.1} parent=5 // pred_region
        %s430 = ssub.s32 %s20, 2
        // Predicated region
        $region61: #{tpu_custom_call.1} parent=59 // pred_check
          %p431 = pneg %p204
        $region62: #{tpu_custom_call.1} parent=59 // pred_check_branch
          %433 = sbr.rel (%p431) target = $region64
        $region63: #{tpu_custom_call.1} parent=59 // pred_region
          %s434 = sand.u32 %s189, 1
          %s435 = scalar_lea.sflag [#allocation5], %s434
          %s436 = sand.u32 %s189, 1
          %s437 = smul.addr %s436, 8
          %s438 = scalar_lea.vmem [#allocation8], %s437
          %440 = dma.done %s435, 128
        $region64: #{tpu_custom_call.1} parent=59 // pred_fallthru
          _
      $region60: #{tpu_custom_call.1} parent=5 // pred_fallthru
        _
    $region6: #{tpu_custom_call.1} parent=1 // loop_footer
      %s24 = sadd.s32 1, %s20
    $region7: #{tpu_custom_call.1} parent=1 // loop_footer_branch
      %19 = sbr.rel target = $region3
    $region8: #{tpu_custom_call.1} parent=1 // loop_exit
      _
    %441 = vsyncpa [#allocation4], 1
    %s442 = scalar_lea.sflag [#allocation4], 1
    %443 = vsyncpa %s442, 1
    %444 = vsyncpa [#allocation7], 1
    %445 = vsyncpa [#allocation5], 1
    %s446 = scalar_lea.sflag [#allocation5], 1
    %447 = vsyncpa %s446, 1

</llo_original>
